<compile_context>
chip_gen: v7x
topology: tpu7x:2x2x1
jax: 0.10.0
libtpu: 0.0.40
codegen_flags: <defaults>
</compile_context>

<pallas_src>
import functools

import jax
import jax.numpy as jnp
from jax.experimental import pallas as pl
from jax.experimental.pallas import tpu as pltpu


def _round_up(x, m):
    return (x + m - 1) // m * m


def _conv_bn_silu_kernel(x_ref, w_ref, scale_ref, bias_ref, o_ref, slab_ref, *,
                         n_taps, cin_pad, wp, kw, out_len_pad):
    # x_ref:     (1, Cin_pad, L)              bf16 flattened zero-padded input (1 batch elt)
    # w_ref:     (Cout, n_taps*Cin_pad)       bf16 weights, taps stacked on contraction axis
    # scale_ref: (Cout, 1) f32                folded BN scale
    # bias_ref:  (Cout, 1) f32                folded BN bias
    # o_ref:     (1, Cout, out_len_pad)       f32 output (junk tail columns dropped outside)
    # slab_ref:  (n_taps*Cin_pad, out_len_pad) bf16 im2col scratch (fully overwritten)

    # Build the im2col slab: one contiguous lane-slice copy per conv tap.  The
    # lane-misaligned slice is paid once here instead of on every MXU feed.
    for t in range(n_taps):                          # KH*KW small & static -> unrolled
        off = (t // kw) * wp + (t % kw)              # flat offset of tap (kh, kw)
        slab_ref[t * cin_pad:(t + 1) * cin_pad, :] = x_ref[0, :, pl.ds(off, out_len_pad)]

    # Single MXU contraction over all taps*channels, f32 accumulation.
    acc = jnp.dot(w_ref[...], slab_ref[...], preferred_element_type=jnp.float32)

    # Folded eval-mode BatchNorm + SiLU epilogue (f32; sigmoid -> EUP slot).
    y = acc * scale_ref[...] + bias_ref[...]
    o_ref[0] = (y * jax.nn.sigmoid(y)).astype(o_ref.dtype)


def conv_bn_silu(x, conv_w, bn_gamma, bn_beta, bn_mean, bn_var, *,
                 stride=1, padding=0, eps=1e-5, compute_dtype=jnp.bfloat16):
    """Fused Conv2d(bias=False) + BatchNorm2d(eval) + SiLU.

    x: (B, C_in, H, W); conv_w: (C_out, C_in, KH, KW); bn_*: (C_out,).
    """
    if stride != 1:
        # TODO(synk): strided conv needs a strided tap gather; not implemented.
        raise NotImplementedError("only stride=1 is supported")
    B, Cin, H, W = x.shape
    Cout, Cin_w, KH, KW = conv_w.shape
    assert Cin == Cin_w
    Hp, Wp = H + 2 * padding, W + 2 * padding
    Ho, Wo = Hp - KH + 1, Wp - KW + 1

    itemsize = jnp.dtype(compute_dtype).itemsize
    cin_pad = _round_up(Cin, 32 // itemsize)         # sublane tile: 8 (f32) / 16 (bf16)
    out_len = Ho * Wp                                # valid cols; per-row tail [Wo,Wp) junk
    out_len_pad = _round_up(out_len, 128)            # lane-dense unmasked output stores
    max_off = (KH - 1) * Wp + (KW - 1)               # largest tap offset
    L = _round_up(max(Hp * Wp, max_off + out_len_pad), 128)
    n_taps = KH * KW
    k_dim = n_taps * cin_pad

    # Conv zero-padding + flatten + channel/lane pad (pure indexing, done by XLA).
    x_pad = jnp.pad(x, ((0, 0), (0, 0), (padding, padding), (padding, padding)))
    x_flat = x_pad.reshape(B, Cin, Hp * Wp)
    x_flat = jnp.pad(x_flat, ((0, 0), (0, cin_pad - Cin), (0, L - Hp * Wp)))
    x_flat = x_flat.astype(compute_dtype)

    # Weights: (Cout, KH, KW, Cin) -> zero-pad Cin -> (Cout, n_taps*cin_pad),
    # tap-major / channel-minor to match the slab stacking order in the kernel.
    w_t = jnp.transpose(conv_w, (0, 2, 3, 1))
    w_t = jnp.pad(w_t, ((0, 0), (0, 0), (0, 0), (0, cin_pad - Cin)))
    w_flat = w_t.reshape(Cout, k_dim).astype(compute_dtype)

    # Fold inference-mode BatchNorm into a per-channel scale / bias (kept in f32).
    inv_std = 1.0 / jnp.sqrt(bn_var.astype(jnp.float32) + eps)
    scale = (bn_gamma * inv_std).astype(jnp.float32).reshape(Cout, 1)
    bias = (bn_beta - bn_mean * bn_gamma * inv_std).astype(jnp.float32).reshape(Cout, 1)

    kernel = functools.partial(
        _conv_bn_silu_kernel, n_taps=n_taps, cin_pad=cin_pad,
        wp=Wp, kw=KW, out_len_pad=out_len_pad)

    cost = pl.CostEstimate(
        flops=2 * B * Cout * k_dim * out_len_pad,
        transcendentals=B * Cout * out_len_pad,
        bytes_accessed=(itemsize * (B * cin_pad * L + Cout * k_dim)
                        + 4 * (2 * Cout + B * Cout * out_len_pad)))

    out_flat = pl.pallas_call(
        kernel,
        out_shape=jax.ShapeDtypeStruct((B, Cout, out_len_pad), jnp.float32),
        grid_spec=pltpu.PrefetchScalarGridSpec(
            num_scalar_prefetch=0,
            grid=(B,),                                # >=2 parallel steps -> v7x megacore
            in_specs=[
                pl.BlockSpec((1, cin_pad, L), lambda b: (b, 0, 0)),
                pl.BlockSpec((Cout, k_dim), lambda b: (0, 0)),
                pl.BlockSpec((Cout, 1), lambda b: (0, 0)),
                pl.BlockSpec((Cout, 1), lambda b: (0, 0)),
            ],
            out_specs=pl.BlockSpec((1, Cout, out_len_pad), lambda b: (b, 0, 0)),
            scratch_shapes=[pltpu.VMEM((k_dim, out_len_pad), compute_dtype)],
        ),
        compiler_params=pltpu.CompilerParams(
            dimension_semantics=("parallel",),
            vmem_limit_bytes=32 * 1024 * 1024),
        cost_estimate=cost,
    )(x_flat, w_flat, scale, bias)

    # Drop the lane pad + per-row wrap-around tail, restore NCHW spatial shape.
    out = out_flat[:, :, :out_len].reshape(B, Cout, Ho, Wp)[:, :, :, :Wo]
    return out.astype(x.dtype)


def _reference(x, conv_w, gamma, beta, mean, var, *, stride=1, padding=0, eps=1e-5):
    # Pure-JAX f32 reference mirroring the PyTorch eval-mode forward.
    y = jax.lax.conv_general_dilated(
        x, conv_w, window_strides=(stride, stride),
        padding=[(padding, padding), (padding, padding)],
        dimension_numbers=("NCHW", "OIHW", "NCHW"),
        precision=jax.lax.Precision.HIGHEST)
    inv_std = 1.0 / jnp.sqrt(var + eps)
    y = (y * (gamma * inv_std)[None, :, None, None]
         + (beta - mean * gamma * inv_std)[None, :, None, None])
    return y * jax.nn.sigmoid(y)


if __name__ == "__main__":
    # ConvBNSiLU(in_channels=4, out_channels=8, kernel_size=3, stride=1, padding=1)
    B, Cin, Cout, H, W, K = 2, 4, 8, 16, 16, 3
    stride, padding = 1, 1

    key = jax.random.PRNGKey(0)
    kx, kw_, kg, kb, km, kv = jax.random.split(key, 6)
    x = jax.random.normal(kx, (B, Cin, H, W), dtype=jnp.float32)
    conv_w = (jax.random.normal(kw_, (Cout, Cin, K, K), dtype=jnp.float32)
              / jnp.sqrt(Cin * K * K))
    gamma = jax.random.uniform(kg, (Cout,), jnp.float32, 0.5, 1.5)
    beta = jax.random.normal(kb, (Cout,), dtype=jnp.float32) * 0.1
    mean = jax.random.normal(km, (Cout,), dtype=jnp.float32) * 0.1
    var = jax.random.uniform(kv, (Cout,), jnp.float32, 0.5, 1.5)

    y = conv_bn_silu(x, conv_w, gamma, beta, mean, var,
                     stride=stride, padding=padding)
    y = jax.block_until_ready(y)

    y_ref = _reference(x, conv_w, gamma, beta, mean, var,
                       stride=stride, padding=padding)
    assert y.shape == y_ref.shape, (y.shape, y_ref.shape)
    # Kernel feeds the MXU bf16 inputs (f32 accumulation), so tolerance vs the
    # pure-f32 reference is set to the expected bf16 rounding level (~1e-2).
    assert jnp.allclose(y, y_ref, atol=3e-2, rtol=3e-2), "mismatch vs reference"

    print("KERNEL_OK")
</pallas_src>

<mosaic_0001>
module attributes {stable_mosaic.version = 11 : i64} {
  func.func @_conv_bn_silu_kernel(%arg0: i32, %arg1: memref<1x16x512xbf16, #tpu.memory_space<vmem>>, %arg2: memref<8x144xbf16, #tpu.memory_space<vmem>>, %arg3: memref<8x1xf32, #tpu.memory_space<vmem>>, %arg4: memref<8x1xf32, #tpu.memory_space<vmem>>, %arg5: memref<1x8x384xf32, #tpu.memory_space<vmem>>, %arg6: memref<144x384xbf16, #tpu.memory_space<vmem>>) attributes {dimension_semantics = [#tpu.dimension_semantics<parallel>], iteration_bounds = array<i64: 2>, scalar_prefetch = 0 : i64, scratch_operands = 1 : i64, tpu.core_type = #tpu.core_type<tc>, window_params = [{transform_indices = @transform_0, window_bounds = array<i64: 1, 16, 512>}, {pipeline_mode = #tpu.pipeline_mode<synchronous>, transform_indices = @transform_1, window_bounds = array<i64: 8, 144>}, {pipeline_mode = #tpu.pipeline_mode<synchronous>, transform_indices = @transform_2, window_bounds = array<i64: 8, 1>}, {pipeline_mode = #tpu.pipeline_mode<synchronous>, transform_indices = @transform_3, window_bounds = array<i64: 8, 1>}, {transform_indices = @transform_4, window_bounds = array<i64: 1, 8, 384>}]} {
    %c0 = arith.constant 0 : index
    %c0_0 = arith.constant 0 : index
    %c0_1 = arith.constant 0 : index
    %0 = vector.load %arg1[%c0, %c0_0, %c0_1] : memref<1x16x512xbf16, #tpu.memory_space<vmem>>, vector<1x16x384xbf16>
    %1 = vector.shape_cast %0 : vector<1x16x384xbf16> to vector<16x384xbf16>
    %c0_2 = arith.constant 0 : index
    %c0_3 = arith.constant 0 : index
    %2 = vector.load %arg6[%c0_2, %c0_3] : memref<144x384xbf16, #tpu.memory_space<vmem>>, vector<16x384xbf16>
    tpu.vector_store %arg6[%c0_2, %c0_3], %1 {strides = array<i32>} : memref<144x384xbf16, #tpu.memory_space<vmem>>, vector<16x384xbf16>,
    %c0_4 = arith.constant 0 : index
    %c0_5 = arith.constant 0 : index
    %c1 = arith.constant 1 : index
    %3 = vector.load %arg1[%c0_4, %c0_5, %c1] : memref<1x16x512xbf16, #tpu.memory_space<vmem>>, vector<1x16x384xbf16>
    %4 = vector.shape_cast %3 : vector<1x16x384xbf16> to vector<16x384xbf16>
    %c16 = arith.constant 16 : index
    %c0_6 = arith.constant 0 : index
    %5 = vector.load %arg6[%c16, %c0_6] : memref<144x384xbf16, #tpu.memory_space<vmem>>, vector<16x384xbf16>
    tpu.vector_store %arg6[%c16, %c0_6], %4 {strides = array<i32>} : memref<144x384xbf16, #tpu.memory_space<vmem>>, vector<16x384xbf16>,
    %c0_7 = arith.constant 0 : index
    %c0_8 = arith.constant 0 : index
    %c2 = arith.constant 2 : index
    %6 = vector.load %arg1[%c0_7, %c0_8, %c2] : memref<1x16x512xbf16, #tpu.memory_space<vmem>>, vector<1x16x384xbf16>
    %7 = vector.shape_cast %6 : vector<1x16x384xbf16> to vector<16x384xbf16>
    %c32 = arith.constant 32 : index
    %c0_9 = arith.constant 0 : index
    %8 = vector.load %arg6[%c32, %c0_9] : memref<144x384xbf16, #tpu.memory_space<vmem>>, vector<16x384xbf16>
    tpu.vector_store %arg6[%c32, %c0_9], %7 {strides = array<i32>} : memref<144x384xbf16, #tpu.memory_space<vmem>>, vector<16x384xbf16>,
    %c0_10 = arith.constant 0 : index
    %c0_11 = arith.constant 0 : index
    %c18 = arith.constant 18 : index
    %9 = vector.load %arg1[%c0_10, %c0_11, %c18] : memref<1x16x512xbf16, #tpu.memory_space<vmem>>, vector<1x16x384xbf16>
    %10 = vector.shape_cast %9 : vector<1x16x384xbf16> to vector<16x384xbf16>
    %c48 = arith.constant 48 : index
    %c0_12 = arith.constant 0 : index
    %11 = vector.load %arg6[%c48, %c0_12] : memref<144x384xbf16, #tpu.memory_space<vmem>>, vector<16x384xbf16>
    tpu.vector_store %arg6[%c48, %c0_12], %10 {strides = array<i32>} : memref<144x384xbf16, #tpu.memory_space<vmem>>, vector<16x384xbf16>,
    %c0_13 = arith.constant 0 : index
    %c0_14 = arith.constant 0 : index
    %c19 = arith.constant 19 : index
    %12 = vector.load %arg1[%c0_13, %c0_14, %c19] : memref<1x16x512xbf16, #tpu.memory_space<vmem>>, vector<1x16x384xbf16>
    %13 = vector.shape_cast %12 : vector<1x16x384xbf16> to vector<16x384xbf16>
    %c64 = arith.constant 64 : index
    %c0_15 = arith.constant 0 : index
    %14 = vector.load %arg6[%c64, %c0_15] : memref<144x384xbf16, #tpu.memory_space<vmem>>, vector<16x384xbf16>
    tpu.vector_store %arg6[%c64, %c0_15], %13 {strides = array<i32>} : memref<144x384xbf16, #tpu.memory_space<vmem>>, vector<16x384xbf16>,
    %c0_16 = arith.constant 0 : index
    %c0_17 = arith.constant 0 : index
    %c20 = arith.constant 20 : index
    %15 = vector.load %arg1[%c0_16, %c0_17, %c20] : memref<1x16x512xbf16, #tpu.memory_space<vmem>>, vector<1x16x384xbf16>
    %16 = vector.shape_cast %15 : vector<1x16x384xbf16> to vector<16x384xbf16>
    %c80 = arith.constant 80 : index
    %c0_18 = arith.constant 0 : index
    %17 = vector.load %arg6[%c80, %c0_18] : memref<144x384xbf16, #tpu.memory_space<vmem>>, vector<16x384xbf16>
    tpu.vector_store %arg6[%c80, %c0_18], %16 {strides = array<i32>} : memref<144x384xbf16, #tpu.memory_space<vmem>>, vector<16x384xbf16>,
    %c0_19 = arith.constant 0 : index
    %c0_20 = arith.constant 0 : index
    %c36 = arith.constant 36 : index
    %18 = vector.load %arg1[%c0_19, %c0_20, %c36] : memref<1x16x512xbf16, #tpu.memory_space<vmem>>, vector<1x16x384xbf16>
    %19 = vector.shape_cast %18 : vector<1x16x384xbf16> to vector<16x384xbf16>
    %c96 = arith.constant 96 : index
    %c0_21 = arith.constant 0 : index
    %20 = vector.load %arg6[%c96, %c0_21] : memref<144x384xbf16, #tpu.memory_space<vmem>>, vector<16x384xbf16>
    tpu.vector_store %arg6[%c96, %c0_21], %19 {strides = array<i32>} : memref<144x384xbf16, #tpu.memory_space<vmem>>, vector<16x384xbf16>,
    %c0_22 = arith.constant 0 : index
    %c0_23 = arith.constant 0 : index
    %c37 = arith.constant 37 : index
    %21 = vector.load %arg1[%c0_22, %c0_23, %c37] : memref<1x16x512xbf16, #tpu.memory_space<vmem>>, vector<1x16x384xbf16>
    %22 = vector.shape_cast %21 : vector<1x16x384xbf16> to vector<16x384xbf16>
    %c112 = arith.constant 112 : index
    %c0_24 = arith.constant 0 : index
    %23 = vector.load %arg6[%c112, %c0_24] : memref<144x384xbf16, #tpu.memory_space<vmem>>, vector<16x384xbf16>
    tpu.vector_store %arg6[%c112, %c0_24], %22 {strides = array<i32>} : memref<144x384xbf16, #tpu.memory_space<vmem>>, vector<16x384xbf16>,
    %c0_25 = arith.constant 0 : index
    %c0_26 = arith.constant 0 : index
    %c38 = arith.constant 38 : index
    %24 = vector.load %arg1[%c0_25, %c0_26, %c38] : memref<1x16x512xbf16, #tpu.memory_space<vmem>>, vector<1x16x384xbf16>
    %25 = vector.shape_cast %24 : vector<1x16x384xbf16> to vector<16x384xbf16>
    %c128 = arith.constant 128 : index
    %c0_27 = arith.constant 0 : index
    %26 = vector.load %arg6[%c128, %c0_27] : memref<144x384xbf16, #tpu.memory_space<vmem>>, vector<16x384xbf16>
    tpu.vector_store %arg6[%c128, %c0_27], %25 {strides = array<i32>} : memref<144x384xbf16, #tpu.memory_space<vmem>>, vector<16x384xbf16>,
    %c0_28 = arith.constant 0 : index
    %c0_29 = arith.constant 0 : index
    %27 = vector.load %arg2[%c0_28, %c0_29] : memref<8x144xbf16, #tpu.memory_space<vmem>>, vector<8x144xbf16>
    %c0_30 = arith.constant 0 : index
    %c0_31 = arith.constant 0 : index
    %28 = vector.load %arg6[%c0_30, %c0_31] : memref<144x384xbf16, #tpu.memory_space<vmem>>, vector<144x384xbf16>
    %cst = arith.constant dense<0.000000e+00> : vector<8x384xf32>
    %29 = tpu.matmul %27, %28, %cst {dimension_numbers = #tpu.dot_dimension_numbers<[1], [0], [0], [1], [0, 0, 1, 1], [], []>} : vector<8x144xbf16>, vector<144x384xbf16>, vector<8x384xf32> -> vector<8x384xf32>
    %c0_32 = arith.constant 0 : index
    %c0_33 = arith.constant 0 : index
    %30 = vector.load %arg3[%c0_32, %c0_33] : memref<8x1xf32, #tpu.memory_space<vmem>>, vector<8x1xf32>
    %31 = vector.broadcast %30 : vector<8x1xf32> to vector<8x384xf32>
    %32 = arith.mulf %29, %31 : vector<8x384xf32>
    %c0_34 = arith.constant 0 : index
    %c0_35 = arith.constant 0 : index
    %33 = vector.load %arg4[%c0_34, %c0_35] : memref<8x1xf32, #tpu.memory_space<vmem>>, vector<8x1xf32>
    %34 = vector.broadcast %33 : vector<8x1xf32> to vector<8x384xf32>
    %35 = arith.addf %32, %34 : vector<8x384xf32>
    %36 = arith.negf %35 : vector<8x384xf32>
    %37 = math.exp %36 : vector<8x384xf32>
    %cst_36 = arith.constant 1.000000e+00 : f32
    %38 = vector.broadcast %cst_36 : f32 to vector<8x384xf32>
    %39 = arith.addf %38, %37 : vector<8x384xf32>
    %40 = arith.divf %38, %39 : vector<8x384xf32>
    %41 = arith.mulf %35, %40 : vector<8x384xf32>
    %c0_37 = arith.constant 0 : index
    %c0_38 = arith.constant 0 : index
    %c0_39 = arith.constant 0 : index
    %42 = vector.load %arg5[%c0_37, %c0_38, %c0_39] : memref<1x8x384xf32, #tpu.memory_space<vmem>>, vector<1x8x384xf32>
    %43 = vector.shape_cast %42 : vector<1x8x384xf32> to vector<8x384xf32>
    %44 = vector.shape_cast %41 : vector<8x384xf32> to vector<1x8x384xf32>
    tpu.vector_store %arg5[%c0_37, %c0_38, %c0_39], %44 {strides = array<i32>} : memref<1x8x384xf32, #tpu.memory_space<vmem>>, vector<1x8x384xf32>,
    return
  }
  func.func @transform_0(%arg0: i32) -> (i32, i32, i32) {
    %c0_i32 = arith.constant 0 : i32
    %c0_i32_0 = arith.constant 0 : i32
    %c0_i32_1 = arith.constant 0 : i32
    return %arg0, %c0_i32, %c0_i32_0 : i32, i32, i32
  }
  func.func @transform_1(%arg0: i32) -> (i32, i32) {
    %c0_i32 = arith.constant 0 : i32
    %c0_i32_0 = arith.constant 0 : i32
    %c0_i32_1 = arith.constant 0 : i32
    return %c0_i32, %c0_i32_0 : i32, i32
  }
  func.func @transform_2(%arg0: i32) -> (i32, i32) {
    %c0_i32 = arith.constant 0 : i32
    %c0_i32_0 = arith.constant 0 : i32
    %c0_i32_1 = arith.constant 0 : i32
    return %c0_i32, %c0_i32_0 : i32, i32
  }
  func.func @transform_3(%arg0: i32) -> (i32, i32) {
    %c0_i32 = arith.constant 0 : i32
    %c0_i32_0 = arith.constant 0 : i32
    %c0_i32_1 = arith.constant 0 : i32
    return %c0_i32, %c0_i32_0 : i32, i32
  }
  func.func @transform_4(%arg0: i32) -> (i32, i32, i32) {
    %c0_i32 = arith.constant 0 : i32
    %c0_i32_0 = arith.constant 0 : i32
    %c0_i32_1 = arith.constant 0 : i32
    return %arg0, %c0_i32, %c0_i32_0 : i32, i32, i32
  }
}

</mosaic_0001>

<llo_original>
// kernel: tpu_custom_call.1
$region0: #{tpu_custom_call.1}
  #allocation0 [shape = 'u32[]', space=smem, size = 0x4, offset = 0x4, fixed_abs, tag = 'smem constant byte address 0x4 - core index']
  #allocation1 [shape = 'u32[144,128]{1,0:T(1,128)}', space=vmem, size = 0x12000, scoped, tag = 'internal scratch']
  #allocation2 [shape = 'bf16[144,384]{1,0:T(16,128)(2,1)}', space=vmem, size = 0x1b000, scoped, tag = 'scratch operand']
  %s0 = inlined_call_operand.hbm [shape: bf16[2,16,512], index: 0, kind: input, shape index: {}]
  %s1 = inlined_call_operand.vmem [shape: bf16[8,144], index: 1, kind: input, shape index: {}]
  %s2 = inlined_call_operand.vmem [shape: f32[8,1], index: 2, kind: input, shape index: {}]
  %s3 = inlined_call_operand.vmem [shape: f32[8,1], index: 3, kind: input, shape index: {}]
  %s4 = inlined_call_operand.hbm [shape: f32[2,8,384], index: 4, kind: output, shape index: {}]
  %s5 = sld [smem:[#allocation0]]
  $region53: #{tpu_custom_call.1} parent=0
    _
  %s7 = ssub.s32 1, %s5
  %s8 = scalar_select 0, %s7, %s5
  $region1: #{tpu_custom_call.1} parent=0
    #allocation3 [shape = 'u8[32768]{0}', space=vmem, size = 0x8000, scoped, tag = 'input window, operand 0']
    #allocation4 [shape = 's32[2]{0}', space=sflag, size = 0x8, scoped, tag = 'scoped memory for tpu_custom_call.1']
    #allocation5 [shape = 's32[2]{0}', space=sflag, size = 0x8, scoped, tag = 'scoped memory for tpu_custom_call.1']
    #allocation6 [shape = 'u8[24576]{0}', space=vmem, size = 0x6000, scoped, tag = 'output window, operand 0']
    %9 = vsyncpa [#allocation4], 0
    %s10 = scalar_lea.sflag [#allocation4], 1
    %11 = vsyncpa %s10, 0
    %12 = vsyncpa [#allocation5], 0
    %s13 = scalar_lea.sflag [#allocation5], 1
    %14 = vsyncpa %s13, 0
    loop: start=0, step=1, limit=4
    $region2: #{tpu_custom_call.1} parent=1 // loop_pre_header
      _
    $region3: #{tpu_custom_call.1} parent=1 // loop_header
      %s16 = sphi 0, %s20
      %p17 = scmp.ge.s32.totalorder %s16, 4
      %s26 = sphi 0, %s28
      %s29 = sphi 0, %s26
      %s30 = sphi 0, %s29
      %s46 = sphi 0, %s30
      %s50 = sphi 0, %s50
      %s52 = sphi 0, %s50
      %s53 = sphi 0, %s52
      %s67 = sphi 0, %s53
      %s71 = sphi 0, %s71
      %s73 = sphi 0, %s71
      %s74 = sphi 0, %s73
      %s88 = sphi 0, %s74
      %s92 = sphi 0, %s92
      %s94 = sphi 0, %s92
      %s95 = sphi 0, %s94
      %s109 = sphi 0, %s95
      %s115 = sphi 0, %s117
      %s118 = sphi 0, %s115
      %s119 = sphi 0, %s118
      %s135 = sphi 0, %s119
    $region4: #{tpu_custom_call.1} parent=1 // loop_header_branch
      %19 = sbr.rel (%p17) target = $region8
    $region5: #{tpu_custom_call.1} parent=1 // loop_body
      %s21 = ssub.s32 %s16, 1
      %s22 = ssub.s32 %s16, 2
      %s23 = sadd.s32 %s16, 1
      %s24 = ssub.s32 %s16, %s23
      %p25 = scmp.eq.s32.totalorder %s24, 0
      %s27 = sadd.s32 %s26, 1
      %s28 = scalar_select %p25, %s26, %s27
      %p31 = pneg %p25
      %p32 = scmp.eq.s32.totalorder %s16, 1
      %p33 = por %p31, %p32
      %p34 = scmp.ne.s32.totalorder %s26, %s29
      %p35 = scmp.eq.s32.totalorder %s16, 0
      %p36 = por %p34, %p35
      %p37 = scmp.ne.s32.totalorder %s26, %s29
      %p38 = scmp.eq.s32.totalorder %s21, 1
      %p39 = por %p37, %p38
      %p40 = scmp.ne.s32.totalorder %s29, %s30
      %p41 = scmp.eq.s32.totalorder %s21, 0
      %p42 = por %p40, %p41
      %p43 = scmp.ne.s32.totalorder %s29, %s30
      %p44 = scmp.eq.s32.totalorder %s22, 1
      %p45 = por %p43, %p44
      %p47 = scmp.ne.s32.totalorder %s30, %s46
      %p48 = scmp.eq.s32.totalorder %s22, 0
      %p49 = por %p47, %p48
      %s51 = sadd.s32 %s50, 1
      %p54 = scmp.eq.s32.totalorder %s16, 1
      %p55 = scmp.ne.s32.totalorder %s50, %s52
      %p56 = scmp.eq.s32.totalorder %s16, 0
      %p57 = por %p55, %p56
      %p58 = scmp.ne.s32.totalorder %s50, %s52
      %p59 = scmp.eq.s32.totalorder %s21, 1
      %p60 = por %p58, %p59
      %p61 = scmp.ne.s32.totalorder %s52, %s53
      %p62 = scmp.eq.s32.totalorder %s21, 0
      %p63 = por %p61, %p62
      %p64 = scmp.ne.s32.totalorder %s52, %s53
      %p65 = scmp.eq.s32.totalorder %s22, 1
      %p66 = por %p64, %p65
      %p68 = scmp.ne.s32.totalorder %s53, %s67
      %p69 = scmp.eq.s32.totalorder %s22, 0
      %p70 = por %p68, %p69
      %s72 = sadd.s32 %s71, 1
      %p75 = scmp.eq.s32.totalorder %s16, 1
      %p76 = scmp.ne.s32.totalorder %s71, %s73
      %p77 = scmp.eq.s32.totalorder %s16, 0
      %p78 = por %p76, %p77
      %p79 = scmp.ne.s32.totalorder %s71, %s73
      %p80 = scmp.eq.s32.totalorder %s21, 1
      %p81 = por %p79, %p80
      %p82 = scmp.ne.s32.totalorder %s73, %s74
      %p83 = scmp.eq.s32.totalorder %s21, 0
      %p84 = por %p82, %p83
      %p85 = scmp.ne.s32.totalorder %s73, %s74
      %p86 = scmp.eq.s32.totalorder %s22, 1
      %p87 = por %p85, %p86
      %p89 = scmp.ne.s32.totalorder %s74, %s88
      %p90 = scmp.eq.s32.totalorder %s22, 0
      %p91 = por %p89, %p90
      %s93 = sadd.s32 %s92, 1
      %p96 = scmp.eq.s32.totalorder %s16, 1
      %p97 = scmp.ne.s32.totalorder %s92, %s94
      %p98 = scmp.eq.s32.totalorder %s16, 0
      %p99 = por %p97, %p98
      %p100 = scmp.ne.s32.totalorder %s92, %s94
      %p101 = scmp.eq.s32.totalorder %s21, 1
      %p102 = por %p100, %p101
      %p103 = scmp.ne.s32.totalorder %s94, %s95
      %p104 = scmp.eq.s32.totalorder %s21, 0
      %p105 = por %p103, %p104
      %p106 = scmp.ne.s32.totalorder %s94, %s95
      %p107 = scmp.eq.s32.totalorder %s22, 1
      %p108 = por %p106, %p107
      %p110 = scmp.ne.s32.totalorder %s95, %s109
      %p111 = scmp.eq.s32.totalorder %s22, 0
      %p112 = por %p110, %p111
      %s113 = ssub.s32 %s16, %s23
      %p114 = scmp.eq.s32.totalorder %s113, 0
      %s116 = sadd.s32 %s115, 1
      %s117 = scalar_select %p114, %s115, %s116
      %p120 = pneg %p114
      %p121 = scmp.eq.s32.totalorder %s16, 1
      %p122 = por %p120, %p121
      %p123 = scmp.ne.s32.totalorder %s115, %s118
      %p124 = scmp.eq.s32.totalorder %s16, 0
      %p125 = por %p123, %p124
      %p126 = scmp.ne.s32.totalorder %s115, %s118
      %p127 = scmp.eq.s32.totalorder %s21, 1
      %p128 = por %p126, %p127
      %p129 = scmp.ne.s32.totalorder %s118, %s119
      %p130 = scmp.eq.s32.totalorder %s21, 0
      %p131 = por %p129, %p130
      %p132 = scmp.ne.s32.totalorder %s118, %s119
      %p133 = scmp.eq.s32.totalorder %s22, 1
      %p134 = por %p132, %p133
      %p136 = scmp.ne.s32.totalorder %s119, %s135
      %p137 = scmp.eq.s32.totalorder %s22, 0
      %p138 = por %p136, %p137
      %p139 = scmp.le.s32.totalorder 1, %s16
      %p140 = scmp.lt.s32.totalorder %s16, 3
      %p141 = pnand %p139, %p140
      %p142 = pneg %p141
      // Predicated region
      $region9: #{tpu_custom_call.1} parent=5 // pred_check
        _
      $region10: #{tpu_custom_call.1} parent=5 // pred_check_branch
        %144 = sbr.rel (%p141) target = $region12
      $region11: #{tpu_custom_call.1} parent=5 // pred_region
        %s145 = ssub.s32 %s16, 1
        // Predicated region
        $region13: #{tpu_custom_call.1} parent=11 // pred_check
          %p146 = pneg %p63
        $region14: #{tpu_custom_call.1} parent=11 // pred_check_branch
          %148 = sbr.rel (%p146) target = $region16
        $region15: #{tpu_custom_call.1} parent=11 // pred_region
          _
        $region16: #{tpu_custom_call.1} parent=11 // pred_fallthru
          _
        // Predicated region
        $region17: #{tpu_custom_call.1} parent=11 // pred_check
          %p149 = pneg %p84
        $region18: #{tpu_custom_call.1} parent=11 // pred_check_branch
          %151 = sbr.rel (%p149) target = $region20
        $region19: #{tpu_custom_call.1} parent=11 // pred_region
          _
        $region20: #{tpu_custom_call.1} parent=11 // pred_fallthru
          _
        // Predicated region
        $region21: #{tpu_custom_call.1} parent=11 // pred_check
          %p152 = pneg %p105
        $region22: #{tpu_custom_call.1} parent=11 // pred_check_branch
          %154 = sbr.rel (%p152) target = $region24
        $region23: #{tpu_custom_call.1} parent=11 // pred_region
          _
        $region24: #{tpu_custom_call.1} parent=11 // pred_fallthru
          _
      $region12: #{tpu_custom_call.1} parent=5 // pred_fallthru
        _
      %p155 = scmp.lt.s32.totalorder %s16, 2
      // Predicated region
      $region25: #{tpu_custom_call.1} parent=5 // pred_check
        %p156 = pneg %p155
      $region26: #{tpu_custom_call.1} parent=5 // pred_check_branch
        %158 = sbr.rel (%p156) target = $region28
      $region27: #{tpu_custom_call.1} parent=5 // pred_region
        // Predicated region
        $region29: #{tpu_custom_call.1} parent=27 // pred_check
          %p159 = pneg %p36
        $region30: #{tpu_custom_call.1} parent=27 // pred_check_branch
          %161 = sbr.rel (%p159) target = $region32
        $region31: #{tpu_custom_call.1} parent=27 // pred_region
          %s162 = sand.u32 %s26, 1
          %s163 = scalar_lea.sflag [#allocation4], %s162
          %s164 = sand.u32 %s26, 1
          %s165 = smul.addr %s164, 32
          %s166 = scalar_lea.vmem [#allocation3], %s165
          %s168 = ssub.s32 512, 512
          %169 = vsyncadd %s163, %s168
          %s170 = smul.addr %s16, 8
          %s171 = smul.addr %s170, 64
          %s172 = scalar_lea.hbm %s0, %s171
          %s173 = sshll.u32 %s166, 4
          %s174 = int_to_ptr.vmem [resolvable:$true] %s173
          %179 = dma.hbm_to_vmem [thread:$0]  %s172, 512, %s174, %s163, 256, 256, 16
        $region32: #{tpu_custom_call.1} parent=27 // pred_fallthru
          _
      $region28: #{tpu_custom_call.1} parent=5 // pred_fallthru
        _
      %p180 = scmp.le.s32.totalorder 1, %s16
      %p181 = scmp.lt.s32.totalorder %s16, 3
      %p182 = pnand %p180, %p181
      %p183 = pneg %p182
      // Predicated region
      $region33: #{tpu_custom_call.1} parent=5 // pred_check
        _
      $region34: #{tpu_custom_call.1} parent=5 // pred_check_branch
        %185 = sbr.rel (%p182) target = $region36
      $region35: #{tpu_custom_call.1} parent=5 // pred_region
        %s186 = ssub.s32 %s16, 1
        %s187 = sand.u32 %s29, 1
        %s188 = scalar_lea.sflag [#allocation4], %s187
        %s189 = sand.u32 %s29, 1
        %s190 = smul.addr %s189, 32
        %s191 = scalar_lea.vmem [#allocation3], %s190
        // Predicated region
        $region37: #{tpu_custom_call.1} parent=35 // pred_check
          %p192 = pneg %p42
        $region38: #{tpu_custom_call.1} parent=35 // pred_check_branch
          %194 = sbr.rel (%p192) target = $region40
        $region39: #{tpu_custom_call.1} parent=35 // pred_region
          %195 = dma.done %s188, 512
        $region40: #{tpu_custom_call.1} parent=35 // pred_fallthru
          _
        %s196 = sand.u32 %s29, 1
        %s197 = scalar_lea.sflag [#allocation4], %s196
        %s198 = sand.u32 %s29, 1
        %s199 = smul.addr %s198, 32
        %s200 = scalar_lea.vmem [#allocation3], %s199
        %p201 = pneg %p42
        %p202 = pneg %p39
        %p203 = pneg %p63
        %p204 = pneg %p60
        %p205 = pneg %p84
        %p206 = pneg %p81
        %p207 = pneg %p105
        %p208 = pneg %p102
        %p209 = pneg %p131
        %p210 = pneg %p128
        %s211 = sand.u32 %s118, 1
        %s212 = scalar_lea.sflag [#allocation5], %s211
        %s213 = sand.u32 %s118, 1
        %s214 = smul.addr %s213, 24
        %s215 = scalar_lea.vmem [#allocation6], %s214
        %v217 = vld [vmem:[%s191] sm:$0xff]
        %v218 = vld [vmem:[%s191 + $0x8] sm:$0xf]
        %v219 = vld [vmem:[%s191 + $0x10] sm:$0xff]
        %v220 = vld [vmem:[%s191 + $0x18] sm:$0xf]
        %v225 = vunpack.c.l.b16 %v217
        %v226 = vunpack.c.h.b16 %v217
        %v227 = vunpack.c.l.b16 %v218
        %v228 = vunpack.c.l.b16 %v219
        %v229 = vunpack.c.h.b16 %v219
        %v230 = vunpack.c.l.b16 %v220
        %v231 = vpack.c.b16 %v228, %v225
        %v232 = vpack.c.b16 %v229, %v226
        %v233 = vpack.c.b16 %v230, %v227
        %237 = vst [vmem:[#allocation2] sm:$0xff] %v231
        %238 = vst [vmem:[#allocation2 + $0x8] sm:$0xff] %v232
        %239 = vst [vmem:[#allocation2 + $0x10] sm:$0xff] %v233
        %v240 = vld [vmem:[%s191] sm:$0xff]
        %v241 = vld [vmem:[%s191 + $0x8] sm:$0xff]
        %v242 = vld [vmem:[%s191 + $0x10] sm:$0xff]
        %v243 = vld [vmem:[%s191 + $0x18] sm:$0xff]
        %v248 = vunpack.c.l.b16 %v240
        %v249 = vunpack.c.h.b16 %v240
        %v250 = vunpack.c.l.b16 %v241
        %v251 = vunpack.c.h.b16 %v241
        %v252 = vunpack.c.l.b16 %v242
        %v253 = vunpack.c.h.b16 %v242
        %v254 = vunpack.c.l.b16 %v243
        %v255 = vunpack.c.h.b16 %v243
        %v256 = vpack.c.b16 %v252, %v248
        %v257 = vpack.c.b16 %v253, %v249
        %v258 = vpack.c.b16 %v254, %v250
        %v259 = vpack.c.b16 %v255, %v251
        %260 = vrot.lane.b32.xlu0 %v256, 127
        %v261 = vpop.permute.xlu0 %260
        %262 = vrot.lane.b32.xlu0 %v257, 127
        %v263 = vpop.permute.xlu0 %262
        %264 = vrot.lane.b32.xlu0 %v258, 127
        %v265 = vpop.permute.xlu0 %264
        %266 = vrot.lane.b32.xlu0 %v259, 127
        %v267 = vpop.permute.xlu0 %266
        %vm268 = vcmask 1039360
        %v269 = vsel %vm268, %v261, %v263
        %v270 = vsel %vm268, %v263, %v265
        %v271 = vsel %vm268, %v265, %v267
        %275 = vst [vmem:[#allocation2 + $0x18] sm:$0xff] %v269
        %276 = vst [vmem:[#allocation2 + $0x20] sm:$0xff] %v270
        %277 = vst [vmem:[#allocation2 + $0x28] sm:$0xff] %v271
        %v278 = vld [vmem:[%s191] sm:$0xff]
        %v279 = vld [vmem:[%s191 + $0x8] sm:$0xff]
        %v280 = vld [vmem:[%s191 + $0x10] sm:$0xff]
        %v281 = vld [vmem:[%s191 + $0x18] sm:$0xff]
        %v286 = vunpack.c.l.b16 %v278
        %v287 = vunpack.c.h.b16 %v278
        %v288 = vunpack.c.l.b16 %v279
        %v289 = vunpack.c.h.b16 %v279
        %v290 = vunpack.c.l.b16 %v280
        %v291 = vunpack.c.h.b16 %v280
        %v292 = vunpack.c.l.b16 %v281
        %v293 = vunpack.c.h.b16 %v281
        %v294 = vpack.c.b16 %v290, %v286
        %v295 = vpack.c.b16 %v291, %v287
        %v296 = vpack.c.b16 %v292, %v288
        %v297 = vpack.c.b16 %v293, %v289
        %298 = vrot.lane.b32.xlu0 %v294, 126
        %v299 = vpop.permute.xlu0 %298
        %300 = vrot.lane.b32.xlu0 %v295, 126
        %v301 = vpop.permute.xlu0 %300
        %302 = vrot.lane.b32.xlu0 %v296, 126
        %v303 = vpop.permute.xlu0 %302
        %304 = vrot.lane.b32.xlu0 %v297, 126
        %v305 = vpop.permute.xlu0 %304
        %vm306 = vcmask 1031168
        %v307 = vsel %vm306, %v299, %v301
        %v308 = vsel %vm306, %v301, %v303
        %v309 = vsel %vm306, %v303, %v305
        %313 = vst [vmem:[#allocation2 + $0x30] sm:$0xff] %v307
        %314 = vst [vmem:[#allocation2 + $0x38] sm:$0xff] %v308
        %315 = vst [vmem:[#allocation2 + $0x40] sm:$0xff] %v309
        %v316 = vld [vmem:[%s191] sm:$0xff]
        %v317 = vld [vmem:[%s191 + $0x8] sm:$0xff]
        %v318 = vld [vmem:[%s191 + $0x10] sm:$0xff]
        %v319 = vld [vmem:[%s191 + $0x18] sm:$0xff]
        %v324 = vunpack.c.l.b16 %v316
        %v325 = vunpack.c.h.b16 %v316
        %v326 = vunpack.c.l.b16 %v317
        %v327 = vunpack.c.h.b16 %v317
        %v328 = vunpack.c.l.b16 %v318
        %v329 = vunpack.c.h.b16 %v318
        %v330 = vunpack.c.l.b16 %v319
        %v331 = vunpack.c.h.b16 %v319
        %v332 = vpack.c.b16 %v328, %v324
        %v333 = vpack.c.b16 %v329, %v325
        %v334 = vpack.c.b16 %v330, %v326
        %v335 = vpack.c.b16 %v331, %v327
        %336 = vrot.lane.b32.xlu0 %v332, 110
        %v337 = vpop.permute.xlu0 %336
        %338 = vrot.lane.b32.xlu0 %v333, 110
        %v339 = vpop.permute.xlu0 %338
        %340 = vrot.lane.b32.xlu0 %v334, 110
        %v341 = vpop.permute.xlu0 %340
        %342 = vrot.lane.b32.xlu0 %v335, 110
        %v343 = vpop.permute.xlu0 %342
        %vm344 = vcmask 900096
        %v345 = vsel %vm344, %v337, %v339
        %v346 = vsel %vm344, %v339, %v341
        %v347 = vsel %vm344, %v341, %v343
        %351 = vst [vmem:[#allocation2 + $0x48] sm:$0xff] %v345
        %352 = vst [vmem:[#allocation2 + $0x50] sm:$0xff] %v346
        %353 = vst [vmem:[#allocation2 + $0x58] sm:$0xff] %v347
        %v354 = vld [vmem:[%s191] sm:$0xff]
        %v355 = vld [vmem:[%s191 + $0x8] sm:$0xff]
        %v356 = vld [vmem:[%s191 + $0x10] sm:$0xff]
        %v357 = vld [vmem:[%s191 + $0x18] sm:$0xff]
        %v362 = vunpack.c.l.b16 %v354
        %v363 = vunpack.c.h.b16 %v354
        %v364 = vunpack.c.l.b16 %v355
        %v365 = vunpack.c.h.b16 %v355
        %v366 = vunpack.c.l.b16 %v356
        %v367 = vunpack.c.h.b16 %v356
        %v368 = vunpack.c.l.b16 %v357
        %v369 = vunpack.c.h.b16 %v357
        %v370 = vpack.c.b16 %v366, %v362
        %v371 = vpack.c.b16 %v367, %v363
        %v372 = vpack.c.b16 %v368, %v364
        %v373 = vpack.c.b16 %v369, %v365
        %374 = vrot.lane.b32.xlu0 %v370, 109
        %v375 = vpop.permute.xlu0 %374
        %376 = vrot.lane.b32.xlu0 %v371, 109
        %v377 = vpop.permute.xlu0 %376
        %378 = vrot.lane.b32.xlu0 %v372, 109
        %v379 = vpop.permute.xlu0 %378
        %380 = vrot.lane.b32.xlu0 %v373, 109
        %v381 = vpop.permute.xlu0 %380
        %vm382 = vcmask 891904
        %v383 = vsel %vm382, %v375, %v377
        %v384 = vsel %vm382, %v377, %v379
        %v385 = vsel %vm382, %v379, %v381
        %389 = vst [vmem:[#allocation2 + $0x60] sm:$0xff] %v383
        %390 = vst [vmem:[#allocation2 + $0x68] sm:$0xff] %v384
        %391 = vst [vmem:[#allocation2 + $0x70] sm:$0xff] %v385
        %v392 = vld [vmem:[%s191] sm:$0xff]
        %v393 = vld [vmem:[%s191 + $0x8] sm:$0xff]
        %v394 = vld [vmem:[%s191 + $0x10] sm:$0xff]
        %v395 = vld [vmem:[%s191 + $0x18] sm:$0xff]
        %v400 = vunpack.c.l.b16 %v392
        %v401 = vunpack.c.h.b16 %v392
        %v402 = vunpack.c.l.b16 %v393
        %v403 = vunpack.c.h.b16 %v393
        %v404 = vunpack.c.l.b16 %v394
        %v405 = vunpack.c.h.b16 %v394
        %v406 = vunpack.c.l.b16 %v395
        %v407 = vunpack.c.h.b16 %v395
        %v408 = vpack.c.b16 %v404, %v400
        %v409 = vpack.c.b16 %v405, %v401
        %v410 = vpack.c.b16 %v406, %v402
        %v411 = vpack.c.b16 %v407, %v403
        %412 = vrot.lane.b32.xlu0 %v408, 108
        %v413 = vpop.permute.xlu0 %412
        %414 = vrot.lane.b32.xlu0 %v409, 108
        %v415 = vpop.permute.xlu0 %414
        %416 = vrot.lane.b32.xlu0 %v410, 108
        %v417 = vpop.permute.xlu0 %416
        %418 = vrot.lane.b32.xlu0 %v411, 108
        %v419 = vpop.permute.xlu0 %418
        %vm420 = vcmask 883712
        %v421 = vsel %vm420, %v413, %v415
        %v422 = vsel %vm420, %v415, %v417
        %v423 = vsel %vm420, %v417, %v419
        %427 = vst [vmem:[#allocation2 + $0x78] sm:$0xff] %v421
        %428 = vst [vmem:[#allocation2 + $0x80] sm:$0xff] %v422
        %429 = vst [vmem:[#allocation2 + $0x88] sm:$0xff] %v423
        %v430 = vld [vmem:[%s191] sm:$0xff]
        %v431 = vld [vmem:[%s191 + $0x8] sm:$0xff]
        %v432 = vld [vmem:[%s191 + $0x10] sm:$0xff]
        %v433 = vld [vmem:[%s191 + $0x18] sm:$0xff]
        %v438 = vunpack.c.l.b16 %v430
        %v439 = vunpack.c.h.b16 %v430
        %v440 = vunpack.c.l.b16 %v431
        %v441 = vunpack.c.h.b16 %v431
        %v442 = vunpack.c.l.b16 %v432
        %v443 = vunpack.c.h.b16 %v432
        %v444 = vunpack.c.l.b16 %v433
        %v445 = vunpack.c.h.b16 %v433
        %v446 = vpack.c.b16 %v442, %v438
        %v447 = vpack.c.b16 %v443, %v439
        %v448 = vpack.c.b16 %v444, %v440
        %v449 = vpack.c.b16 %v445, %v441
        %450 = vrot.lane.b32.xlu0 %v446, 92
        %v451 = vpop.permute.xlu0 %450
        %452 = vrot.lane.b32.xlu0 %v447, 92
        %v453 = vpop.permute.xlu0 %452
        %454 = vrot.lane.b32.xlu0 %v448, 92
        %v455 = vpop.permute.xlu0 %454
        %456 = vrot.lane.b32.xlu0 %v449, 92
        %v457 = vpop.permute.xlu0 %456
        %vm458 = vcmask 752640
        %v459 = vsel %vm458, %v451, %v453
        %v460 = vsel %vm458, %v453, %v455
        %v461 = vsel %vm458, %v455, %v457
        %465 = vst [vmem:[#allocation2 + $0x90] sm:$0xff] %v459
        %466 = vst [vmem:[#allocation2 + $0x98] sm:$0xff] %v460
        %467 = vst [vmem:[#allocation2 + $0xa0] sm:$0xff] %v461
        %v468 = vld [vmem:[%s191] sm:$0xff]
        %v469 = vld [vmem:[%s191 + $0x8] sm:$0xff]
        %v470 = vld [vmem:[%s191 + $0x10] sm:$0xff]
        %v471 = vld [vmem:[%s191 + $0x18] sm:$0xff]
        %v476 = vunpack.c.l.b16 %v468
        %v477 = vunpack.c.h.b16 %v468
        %v478 = vunpack.c.l.b16 %v469
        %v479 = vunpack.c.h.b16 %v469
        %v480 = vunpack.c.l.b16 %v470
        %v481 = vunpack.c.h.b16 %v470
        %v482 = vunpack.c.l.b16 %v471
        %v483 = vunpack.c.h.b16 %v471
        %v484 = vpack.c.b16 %v480, %v476
        %v485 = vpack.c.b16 %v481, %v477
        %v486 = vpack.c.b16 %v482, %v478
        %v487 = vpack.c.b16 %v483, %v479
        %488 = vrot.lane.b32.xlu0 %v484, 91
        %v489 = vpop.permute.xlu0 %488
        %490 = vrot.lane.b32.xlu0 %v485, 91
        %v491 = vpop.permute.xlu0 %490
        %492 = vrot.lane.b32.xlu0 %v486, 91
        %v493 = vpop.permute.xlu0 %492
        %494 = vrot.lane.b32.xlu0 %v487, 91
        %v495 = vpop.permute.xlu0 %494
        %vm496 = vcmask 744448
        %v497 = vsel %vm496, %v489, %v491
        %v498 = vsel %vm496, %v491, %v493
        %v499 = vsel %vm496, %v493, %v495
        %503 = vst [vmem:[#allocation2 + $0xa8] sm:$0xff] %v497
        %504 = vst [vmem:[#allocation2 + $0xb0] sm:$0xff] %v498
        %505 = vst [vmem:[#allocation2 + $0xb8] sm:$0xff] %v499
        %v506 = vld [vmem:[%s191] sm:$0xff]
        %v507 = vld [vmem:[%s191 + $0x8] sm:$0xff]
        %v508 = vld [vmem:[%s191 + $0x10] sm:$0xff]
        %v509 = vld [vmem:[%s191 + $0x18] sm:$0xff]
        %v514 = vunpack.c.l.b16 %v506
        %v515 = vunpack.c.h.b16 %v506
        %v516 = vunpack.c.l.b16 %v507
        %v517 = vunpack.c.h.b16 %v507
        %v518 = vunpack.c.l.b16 %v508
        %v519 = vunpack.c.h.b16 %v508
        %v520 = vunpack.c.l.b16 %v509
        %v521 = vunpack.c.h.b16 %v509
        %v522 = vpack.c.b16 %v518, %v514
        %v523 = vpack.c.b16 %v519, %v515
        %v524 = vpack.c.b16 %v520, %v516
        %v525 = vpack.c.b16 %v521, %v517
        %526 = vrot.lane.b32.xlu0 %v522, 90
        %v527 = vpop.permute.xlu0 %526
        %528 = vrot.lane.b32.xlu0 %v523, 90
        %v529 = vpop.permute.xlu0 %528
        %530 = vrot.lane.b32.xlu0 %v524, 90
        %v531 = vpop.permute.xlu0 %530
        %532 = vrot.lane.b32.xlu0 %v525, 90
        %v533 = vpop.permute.xlu0 %532
        %vm534 = vcmask 736256
        %v535 = vsel %vm534, %v527, %v529
        %v536 = vsel %vm534, %v529, %v531
        %v537 = vsel %vm534, %v531, %v533
        %541 = vst [vmem:[#allocation2 + $0xc0] sm:$0xff] %v535
        %542 = vst [vmem:[#allocation2 + $0xc8] sm:$0xff] %v536
        %543 = vst [vmem:[#allocation2 + $0xd0] sm:$0xff] %v537
        %v544 = vld [vmem:[%s1] sm:$0xff]
        %v545 = vld [vmem:[#allocation2] sm:$0xff]
        %v546 = vld [vmem:[#allocation2 + $0x8] sm:$0xff]
        %v547 = vld [vmem:[#allocation2 + $0x10] sm:$0xff]
        %v548 = vld [vmem:[#allocation2 + $0x18] sm:$0xff]
        %v549 = vld [vmem:[#allocation2 + $0x20] sm:$0xff]
        %v550 = vld [vmem:[#allocation2 + $0x28] sm:$0xff]
        %v551 = vld [vmem:[#allocation2 + $0x30] sm:$0xff]
        %v552 = vld [vmem:[#allocation2 + $0x38] sm:$0xff]
        %v553 = vld [vmem:[#allocation2 + $0x40] sm:$0xff]
        %v554 = vld [vmem:[#allocation2 + $0x48] sm:$0xff]
        %v555 = vld [vmem:[#allocation2 + $0x50] sm:$0xff]
        %v556 = vld [vmem:[#allocation2 + $0x58] sm:$0xff]
        %v557 = vld [vmem:[#allocation2 + $0x60] sm:$0xff]
        %v558 = vld [vmem:[#allocation2 + $0x68] sm:$0xff]
        %v559 = vld [vmem:[#allocation2 + $0x70] sm:$0xff]
        %v560 = vld [vmem:[#allocation2 + $0x78] sm:$0xff]
        %v561 = vld [vmem:[#allocation2 + $0x80] sm:$0xff]
        %v562 = vld [vmem:[#allocation2 + $0x88] sm:$0xff]
        %v563 = vld [vmem:[#allocation2 + $0x90] sm:$0xff]
        %v564 = vld [vmem:[#allocation2 + $0x98] sm:$0xff]
        %v565 = vld [vmem:[#allocation2 + $0xa0] sm:$0xff]
        %v566 = vld [vmem:[#allocation2 + $0xa8] sm:$0xff]
        %v567 = vld [vmem:[#allocation2 + $0xb0] sm:$0xff]
        %v568 = vld [vmem:[#allocation2 + $0xb8] sm:$0xff]
        %v569 = vld [vmem:[#allocation2 + $0xc0] sm:$0xff]
        %v570 = vld [vmem:[#allocation2 + $0xc8] sm:$0xff]
        %v571 = vld [vmem:[#allocation2 + $0xd0] sm:$0xff]
        %v573 = vunpack.c.l.b16 %v544
        %v574 = vunpack.c.h.b16 %v544
        %v575 = vpack.c.b16 %v573, %v573
        %v576 = vpack.c.b16 %v574, %v574
        %vm578 = vcmask 130048
        %v580 = vsel %vm578, %v576, 0
        %582 = vmatprep.subr.bf16.mxu0 %v546
        %583 = vmatpush1.bf16.msra.mxu0 %v545
        %584 = vmatprep.subr.bf16.mxu0 %v549
        %585 = vmatpush1.bf16.msra.mxu0 %v548
        %586 = vmatprep.subr.bf16.mxu0 %v552
        %587 = vmatpush1.bf16.msra.mxu0 %v551
        %588 = vmatprep.subr.bf16.mxu0 %v555
        %589 = vmatpush1.bf16.msra.mxu0 %v554
        %590 = vmatprep.subr.bf16.mxu0 %v558
        %591 = vmatpush1.bf16.msra.mxu0 %v557
        %592 = vmatprep.subr.bf16.mxu0 %v561
        %593 = vmatpush1.bf16.msra.mxu0 %v560
        %594 = vmatprep.subr.bf16.mxu0 %v564
        %595 = vmatpush1.bf16.msra.mxu0 %v563
        %596 = vmatprep.subr.bf16.mxu0 %v567
        %597 = vmatpush1.bf16.msra.mxu0 %v566
        %598 = vmatprep.subr.bf16.mxu0 %v570
        %599 = vmatpush1.bf16.msra.mxu0 %v569
        %600 = vmatprep.subr.bf16.mxu0 0
        %601 = vmatpush1.bf16.msra.mxu0 0
        %602 = vmatprep.subr.bf16.mxu0 0
        %603 = vmatpush1.bf16.msra.mxu0 0
        %604 = vmatprep.subr.bf16.mxu0 0
        %605 = vmatpush1.bf16.msra.mxu0 0
        %606 = vmatprep.subr.bf16.mxu0 0
        %607 = vmatpush1.bf16.msra.mxu0 0
        %608 = vmatprep.subr.bf16.mxu0 0
        %609 = vmatpush1.bf16.msra.mxu0 0
        %610 = vmatprep.subr.bf16.mxu0 0
        %611 = vmatpush1.bf16.msra.mxu0 0
        %612 = vmatprep.subr.bf16.mxu0 0
        %613 = vmatpush1.bf16.msra.mxu0 0
        %614 = vmatprep.mubr.bf16.mxu0 %v580
        %615 = vmatmul.mubr.bf16.gmra.mrb[0].mxu0 %v575
        %v616 = vpop.f32.mrb[0].mxu0
        %v617 = vadd.f32 0.0, %v616
        %v618 = vpop.f32.mrb[0].mxu0
        %v619 = vadd.f32 0.0, %v618
        %v620 = vpop.f32.mrb[0].mxu0
        %v621 = vpop.f32.mrb[0].mxu0
        %622 = vdwg.mxu0
        %623 = vmatprep.subr.bf16.mxu0 0
        %624 = vmatpush1.bf16.msra.mxu0 %v547
        %625 = vmatprep.subr.bf16.mxu0 0
        %626 = vmatpush1.bf16.msra.mxu0 %v550
        %627 = vmatprep.subr.bf16.mxu0 0
        %628 = vmatpush1.bf16.msra.mxu0 %v553
        %629 = vmatprep.subr.bf16.mxu0 0
        %630 = vmatpush1.bf16.msra.mxu0 %v556
        %631 = vmatprep.subr.bf16.mxu0 0
        %632 = vmatpush1.bf16.msra.mxu0 %v559
        %633 = vmatprep.subr.bf16.mxu0 0
        %634 = vmatpush1.bf16.msra.mxu0 %v562
        %635 = vmatprep.subr.bf16.mxu0 0
        %636 = vmatpush1.bf16.msra.mxu0 %v565
        %637 = vmatprep.subr.bf16.mxu0 0
        %638 = vmatpush1.bf16.msra.mxu0 %v568
        %639 = vmatprep.subr.bf16.mxu0 0
        %640 = vmatpush1.bf16.msra.mxu0 %v571
        %641 = vmatprep.subr.bf16.mxu0 0
        %642 = vmatpush1.bf16.msra.mxu0 0
        %643 = vmatprep.subr.bf16.mxu0 0
        %644 = vmatpush1.bf16.msra.mxu0 0
        %645 = vmatprep.subr.bf16.mxu0 0
        %646 = vmatpush1.bf16.msra.mxu0 0
        %647 = vmatprep.subr.bf16.mxu0 0
        %648 = vmatpush1.bf16.msra.mxu0 0
        %649 = vmatprep.subr.bf16.mxu0 0
        %650 = vmatpush1.bf16.msra.mxu0 0
        %651 = vmatprep.subr.bf16.mxu0 0
        %652 = vmatpush1.bf16.msra.mxu0 0
        %653 = vmatprep.subr.bf16.mxu0 0
        %654 = vmatpush1.bf16.msra.mxu0 0
        %655 = vmatprep.mubr.bf16.mxu0 %v580
        %656 = vmatmul.mubr.bf16.gmra.mrb[0].mxu0 %v575
        %v657 = vpop.f32.mrb[0].mxu0
        %v658 = vadd.f32 0.0, %v657
        %v659 = vpop.f32.mrb[0].mxu0
        %v660 = vpop.f32.mrb[0].mxu0
        %v661 = vpop.f32.mrb[0].mxu0
        %662 = vdwg.mxu0
        %v663 = vld [vmem:[%s2] sm:$0xff]
        %665 = vset.pattern.permute.xlu0 0
        %666 = vperm.xlu0 %665, %v663
        %v667 = vpop.permute.xlu0 %666
        %v669 = vmul.f32 %v617, %v667
        %v670 = vmul.f32 %v619, %v667
        %v671 = vmul.f32 %v658, %v667
        %v672 = vld [vmem:[%s3] sm:$0xff]
        %674 = vset.pattern.permute.xlu0 0
        %675 = vperm.xlu0 %674, %v672
        %v676 = vpop.permute.xlu0 %675
        %v678 = vadd.f32 %v669, %v676
        %v679 = vadd.f32 %v670, %v676
        %v680 = vadd.f32 %v671, %v676
        %v681 = vxor.u32 %v678, 2147483648
        %v682 = vxor.u32 %v679, 2147483648
        %v683 = vxor.u32 %v680, 2147483648
        %v684 = vmul.f32 %v681, 1.442695
        %v685 = vpow.pop %v684
        %v686 = vmul.f32 %v682, 1.442695
        %v687 = vpow.pop %v686
        %v688 = vmul.f32 %v683, 1.442695
        %v689 = vpow.pop %v688
        %v690 = vadd.f32 %v685, 1.0
        %v691 = vadd.f32 %v687, 1.0
        %v692 = vadd.f32 %v689, 1.0
        %v693 = vrcp.pop %v690
        %v694 = vmul.f32 1.0, %v693
        %v695 = vrcp.pop %v691
        %v696 = vmul.f32 1.0, %v695
        %v697 = vrcp.pop %v692
        %v698 = vmul.f32 1.0, %v697
        %v699 = vmul.f32 %v678, %v694
        %v700 = vmul.f32 %v679, %v696
        %v701 = vmul.f32 %v680, %v698
        %702 = vst [vmem:[%s215] sm:$0xff] %v699
        %703 = vst [vmem:[%s215 + $0x8] sm:$0xff] %v700
        %704 = vst [vmem:[%s215 + $0x10] sm:$0xff] %v701
        %s705 = sand.u32 %s118, 1
        %s706 = scalar_lea.sflag [#allocation5], %s705
        %s707 = sand.u32 %s118, 1
        %s708 = smul.addr %s707, 24
        %s709 = scalar_lea.vmem [#allocation6], %s708
        // Predicated region
        $region41: #{tpu_custom_call.1} parent=35 // pred_check
          %p710 = pneg %p128
        $region42: #{tpu_custom_call.1} parent=35 // pred_check_branch
          %712 = sbr.rel (%p710) target = $region44
        $region43: #{tpu_custom_call.1} parent=35 // pred_region
          %s714 = ssub.s32 384, 384
          %715 = vsyncadd %s706, %s714
          %s716 = smul.addr %s21, 3
          %s717 = smul.addr %s716, 128
          %s718 = scalar_lea.hbm %s4, %s717
          %s720 = sshll.u32 %s709, 4
          %s721 = int_to_ptr.vmem [resolvable:$true] %s720
          %723 = dma.vmem_to_hbm [thread:$0]  %s721, 384, %s718, %s706
        $region44: #{tpu_custom_call.1} parent=35 // pred_fallthru
          _
      $region36: #{tpu_custom_call.1} parent=5 // pred_fallthru
        _
      %p724 = scmp.le.s32.totalorder 2, %s16
      // Predicated region
      $region45: #{tpu_custom_call.1} parent=5 // pred_check
        %p725 = pneg %p724
      $region46: #{tpu_custom_call.1} parent=5 // pred_check_branch
        %727 = sbr.rel (%p725) target = $region48
      $region47: #{tpu_custom_call.1} parent=5 // pred_region
        %s728 = ssub.s32 %s16, 2
        // Predicated region
        $region49: #{tpu_custom_call.1} parent=47 // pred_check
          %p729 = pneg %p134
        $region50: #{tpu_custom_call.1} parent=47 // pred_check_branch
          %731 = sbr.rel (%p729) target = $region52
        $region51: #{tpu_custom_call.1} parent=47 // pred_region
          %s732 = sand.u32 %s119, 1
          %s733 = scalar_lea.sflag [#allocation5], %s732
          %s734 = sand.u32 %s119, 1
          %s735 = smul.addr %s734, 24
          %s736 = scalar_lea.vmem [#allocation6], %s735
          %737 = dma.done %s733, 384
        $region52: #{tpu_custom_call.1} parent=47 // pred_fallthru
          _
      $region48: #{tpu_custom_call.1} parent=5 // pred_fallthru
        _
    $region6: #{tpu_custom_call.1} parent=1 // loop_footer
      %s20 = sadd.s32 1, %s16
    $region7: #{tpu_custom_call.1} parent=1 // loop_footer_branch
      %15 = sbr.rel target = $region3
    $region8: #{tpu_custom_call.1} parent=1 // loop_exit
      _
    %738 = vsyncpa [#allocation4], 1
    %s739 = scalar_lea.sflag [#allocation4], 1
    %740 = vsyncpa %s739, 1
    %741 = vsyncpa [#allocation5], 1
    %s742 = scalar_lea.sflag [#allocation5], 1
    %743 = vsyncpa %s742, 1

</llo_original>
